<compile_context>
chip_gen: v7x
topology: tpu7x:2x2x1
jax: 0.10.0
libtpu: 0.0.40
codegen_flags: <defaults>
</compile_context>

<pallas_src>
import functools

import jax
import jax.numpy as jnp
from jax.experimental import pallas as pl
from jax.experimental.pallas import tpu as pltpu


def _math_path_kernel(x_ref, w1t_ref, b1_ref, mtf_ref, wc_ref, bc_ref,
                      sh_ref, hm_ref, o_ref):
    n, in_dim = x_ref.shape                 # (N, in_dim)
    nn = wc_ref.shape[1]                    # N (edge output width)
    bs = mtf_ref.shape[0]                   # B * S  (S == N)
    seq = n
    batch = bs // seq                       # static (== 2)

    # ---- multi-head linear + per-head softmax + head-mean (all heads in one 128-lane row) ----
    y = jnp.dot(x_ref[...], w1t_ref[...],
                preferred_element_type=jnp.float32) + b1_ref[...]          # (N, HD)
    # Single global row max (>= every per-head max) keeps exp() from overflowing.
    # TODO(synk): if any head's logits sit ~87+ below the row's global max its exp() underflows
    # to 0; the maximum() guard below avoids NaN (yields 0 for that head instead). Exact per-head
    # max would need a lane-segmented max; not worth it for this overhead-bound kernel.
    y = y - jnp.max(y, axis=-1, keepdims=True)
    e = jnp.exp(y)
    # per-head denominators via one MXU matmul with the precomputed (HD,HD) same-head 0/1 matrix
    denom = jnp.dot(e, sh_ref[...], preferred_element_type=jnp.float32)    # (N, HD)
    denom = jnp.maximum(denom, 1e-30)
    p = e * pl.reciprocal(denom, approx=False)                             # per-head softmax
    # mean over heads via one MXU matmul with the precomputed (HD, in_dim) fold matrix
    in_feat = jnp.dot(p, hm_ref[...], preferred_element_type=jnp.float32)  # (N, in_dim)

    # ---- folded encoder/edge projection: one matmul over the flattened (B*S, N) batch ----
    edge_all = jnp.dot(mtf_ref[...], wc_ref[...],
                       preferred_element_type=jnp.float32)                 # (B*S, N)
    # batch mean/max over static S-row sublane blocks (batch == 2 -> one add, one maximum)
    sum_e = edge_all[0:seq, :]
    max_e = edge_all[0:seq, :]
    for b in range(1, batch):
        blk = edge_all[b * seq:(b + 1) * seq, :]
        sum_e = sum_e + blk
        max_e = jnp.maximum(max_e, blk)
    mean_e = sum_e * (1.0 / batch) + bc_ref[...]                           # edge.mean(dim=0)
    max_e = max_e + bc_ref[...]                                            # edge.max(dim=0)

    # ---- single lane-concat + single full store (no masked partial-lane stores) ----
    o_ref[...] = jnp.concatenate([in_feat, mean_e, max_e], axis=-1)


def prepare_math_path_params(w1, b1, we, be, weight_matrix, *, heads):
    """One-time (init-time) parameter prep; keep this OFF the per-call forward path."""
    out_hd, in_dim = w1.shape
    assert out_hd == heads * in_dim
    hd = heads * in_dim
    hp = jax.lax.Precision.HIGHEST

    w1t = w1.T                                                    # (in_dim, heads*in_dim)
    b1_row = b1.reshape(1, hd)                                    # (1, HD)
    wc = jnp.matmul(we.T, weight_matrix, precision=hp)            # (N, N): folded encoder+edge
    bc = jnp.matmul(be[None, :], weight_matrix, precision=hp)     # (1, N): folded bias

    # constant 0/1 matrices used to do per-head softmax / head-mean as MXU matmuls
    ih = jnp.arange(hd, dtype=jnp.int32)
    same_head = ((ih[:, None] // in_dim) == (ih[None, :] // in_dim)).astype(jnp.float32)  # (HD,HD)
    head_mean = ((ih[:, None] % in_dim) ==
                 jnp.arange(in_dim, dtype=jnp.int32)[None, :]).astype(jnp.float32) / heads  # (HD,in_dim)

    return dict(w1t=w1t, b1_row=b1_row, wc=wc, bc=bc,
                same_head=same_head, head_mean=head_mean)


@jax.jit
def math_path_layer_forward(path_nodes, mean_tensor, params):
    n, in_dim = path_nodes.shape
    batch, seq, nn = mean_tensor.shape
    assert seq == n and nn == n, "dim-1 concat in the original module requires N == seq_length"
    assert batch == 2, "batch_size is fixed to 2 (undefined in the original module)"

    mt_flat = mean_tensor.reshape(batch * seq, nn)                # (B*S, N): one matmul in-kernel

    vmem = pl.BlockSpec(memory_space=pltpu.MemorySpace.VMEM)
    return pl.pallas_call(
        _math_path_kernel,
        out_shape=jax.ShapeDtypeStruct((n, in_dim + 2 * n), jnp.float32),
        in_specs=[vmem] * 8,
        out_specs=vmem,
    )(path_nodes, params["w1t"], params["b1_row"], mt_flat,
      params["wc"], params["bc"], params["same_head"], params["head_mean"])


if __name__ == "__main__":
    in_dim, heads = 32, 4
    N = 8                      # len(path_nodes); must equal seq_length for the dim-1 concat
    seq_length = N
    batch_size = 2             # undefined in the original module; chosen deterministically here
    output_size = 256

    key = jax.random.PRNGKey(0)
    k = jax.random.split(key, 7)

    path_nodes = jax.random.normal(k[0], (N, in_dim), jnp.float32)

    # nn.Linear(in_dim, in_dim*heads): weight (out, in), bias (out)
    bound1 = 1.0 / (in_dim ** 0.5)
    w1 = jax.random.uniform(k[1], (in_dim * heads, in_dim), jnp.float32, -bound1, bound1)
    b1 = jax.random.uniform(k[2], (in_dim * heads,), jnp.float32, -bound1, bound1)

    # LinearEncoder: nn.Linear(N, 256)
    bound2 = 1.0 / (N ** 0.5)
    we = jax.random.uniform(k[3], (output_size, N), jnp.float32, -bound2, bound2)
    be = jax.random.uniform(k[4], (output_size,), jnp.float32, -bound2, bound2)

    # torch.randn(...) tensors, made deterministic
    mean_tensor = jax.random.normal(k[5], (batch_size, seq_length, N), jnp.float32)
    weight_matrix = jax.random.normal(k[6], (output_size, N), jnp.float32)

    # one-time parameter prep (off the per-call path), then the fused forward
    params = prepare_math_path_params(w1, b1, we, be, weight_matrix, heads=heads)
    params = jax.tree_util.tree_map(jax.block_until_ready, params)

    feature = math_path_layer_forward(path_nodes, mean_tensor, params)
    feature = jax.block_until_ready(feature)

    # Pure-JAX reference check (original, unfolded formulation).
    hp = jax.lax.Precision.HIGHEST
    y = jnp.matmul(path_nodes, w1.T, precision=hp) + b1
    in_ref = jax.nn.softmax(y.reshape(N, heads, in_dim), axis=-1).mean(axis=1)
    enc = jnp.matmul(mean_tensor, we.T, precision=hp) + be
    edge = jnp.matmul(enc, weight_matrix, precision=hp)
    mid_ref = jnp.concatenate([edge.mean(axis=0), edge.max(axis=0)], axis=-1)
    ref = jnp.concatenate([in_ref, mid_ref], axis=1)

    assert feature.shape == (N, in_dim + 2 * N)
    # tolerance covers the FP reassociation introduced by folding we/be into wc/bc
    assert jnp.allclose(feature, ref, atol=2e-3, rtol=2e-3), float(jnp.max(jnp.abs(feature - ref)))

    print("KERNEL_OK")
</pallas_src>

<mosaic_0001>
module attributes {stable_mosaic.version = 11 : i64} {
  func.func @_math_path_kernel(%arg0: memref<8x32xf32, #tpu.memory_space<vmem>>, %arg1: memref<32x128xf32, #tpu.memory_space<vmem>>, %arg2: memref<1x128xf32, #tpu.memory_space<vmem>>, %arg3: memref<16x8xf32, #tpu.memory_space<vmem>>, %arg4: memref<8x8xf32, #tpu.memory_space<vmem>>, %arg5: memref<1x8xf32, #tpu.memory_space<vmem>>, %arg6: memref<128x128xf32, #tpu.memory_space<vmem>>, %arg7: memref<128x32xf32, #tpu.memory_space<vmem>>, %arg8: memref<8x48xf32, #tpu.memory_space<vmem>>) attributes {dimension_semantics = [], scalar_prefetch = 0 : i64, scratch_operands = 0 : i64, tpu.core_type = #tpu.core_type<tc>} {
    %c0 = arith.constant 0 : index
    %c0_0 = arith.constant 0 : index
    %0 = vector.load %arg0[%c0, %c0_0] : memref<8x32xf32, #tpu.memory_space<vmem>>, vector<8x32xf32>
    %c0_1 = arith.constant 0 : index
    %c0_2 = arith.constant 0 : index
    %1 = vector.load %arg1[%c0_1, %c0_2] : memref<32x128xf32, #tpu.memory_space<vmem>>, vector<32x128xf32>
    %cst = arith.constant dense<0.000000e+00> : vector<8x128xf32>
    %2 = tpu.matmul %0, %1, %cst {dimension_numbers = #tpu.dot_dimension_numbers<[1], [0], [0], [1], [0, 0, 1, 1], [], []>} : vector<8x32xf32>, vector<32x128xf32>, vector<8x128xf32> -> vector<8x128xf32>
    %c0_3 = arith.constant 0 : index
    %c0_4 = arith.constant 0 : index
    %3 = vector.load %arg2[%c0_3, %c0_4] : memref<1x128xf32, #tpu.memory_space<vmem>>, vector<1x128xf32>
    %4 = vector.broadcast %3 : vector<1x128xf32> to vector<8x128xf32>
    %5 = arith.addf %2, %4 : vector<8x128xf32>
    %cst_5 = arith.constant dense<0xFF800000> : vector<8xf32>
    %6 = vector.multi_reduction <maximumf>, %5, %cst_5 [1] : vector<8x128xf32> to vector<8xf32>
    %7 = vector.shape_cast %6 : vector<8xf32> to vector<8x1xf32>
    %8 = vector.broadcast %7 : vector<8x1xf32> to vector<8x128xf32>
    %9 = arith.subf %5, %8 : vector<8x128xf32>
    %10 = math.exp %9 : vector<8x128xf32>
    %c0_6 = arith.constant 0 : index
    %c0_7 = arith.constant 0 : index
    %11 = vector.load %arg6[%c0_6, %c0_7] : memref<128x128xf32, #tpu.memory_space<vmem>>, vector<128x128xf32>
    %cst_8 = arith.constant dense<0.000000e+00> : vector<8x128xf32>
    %12 = tpu.matmul %10, %11, %cst_8 {dimension_numbers = #tpu.dot_dimension_numbers<[1], [0], [0], [1], [0, 0, 1, 1], [], []>} : vector<8x128xf32>, vector<128x128xf32>, vector<8x128xf32> -> vector<8x128xf32>
    %cst_9 = arith.constant 1.000000e-30 : f32
    %13 = vector.broadcast %cst_9 : f32 to vector<8x128xf32>
    %14 = arith.maximumf %12, %13 : vector<8x128xf32>
    %15 = tpu.reciprocal %14 : vector<8x128xf32> -> vector<8x128xf32>
    %16 = arith.mulf %10, %15 : vector<8x128xf32>
    %c0_10 = arith.constant 0 : index
    %c0_11 = arith.constant 0 : index
    %17 = vector.load %arg7[%c0_10, %c0_11] : memref<128x32xf32, #tpu.memory_space<vmem>>, vector<128x32xf32>
    %cst_12 = arith.constant dense<0.000000e+00> : vector<8x32xf32>
    %18 = tpu.matmul %16, %17, %cst_12 {dimension_numbers = #tpu.dot_dimension_numbers<[1], [0], [0], [1], [0, 0, 1, 1], [], []>} : vector<8x128xf32>, vector<128x32xf32>, vector<8x32xf32> -> vector<8x32xf32>
    %c0_13 = arith.constant 0 : index
    %c0_14 = arith.constant 0 : index
    %19 = vector.load %arg3[%c0_13, %c0_14] : memref<16x8xf32, #tpu.memory_space<vmem>>, vector<16x8xf32>
    %c0_15 = arith.constant 0 : index
    %c0_16 = arith.constant 0 : index
    %20 = vector.load %arg4[%c0_15, %c0_16] : memref<8x8xf32, #tpu.memory_space<vmem>>, vector<8x8xf32>
    %cst_17 = arith.constant dense<0.000000e+00> : vector<16x8xf32>
    %21 = tpu.matmul %19, %20, %cst_17 {dimension_numbers = #tpu.dot_dimension_numbers<[1], [0], [0], [1], [0, 0, 1, 1], [], []>} : vector<16x8xf32>, vector<8x8xf32>, vector<16x8xf32> -> vector<16x8xf32>
    %22 = vector.extract_strided_slice %21 {offsets = [0, 0], sizes = [8, 8], strides = [1, 1]} : vector<16x8xf32> to vector<8x8xf32>
    %23 = vector.extract_strided_slice %21 {offsets = [0, 0], sizes = [8, 8], strides = [1, 1]} : vector<16x8xf32> to vector<8x8xf32>
    %24 = vector.extract_strided_slice %21 {offsets = [8, 0], sizes = [8, 8], strides = [1, 1]} : vector<16x8xf32> to vector<8x8xf32>
    %25 = arith.addf %22, %24 : vector<8x8xf32>
    %26 = arith.maximumf %23, %24 : vector<8x8xf32>
    %cst_18 = arith.constant 5.000000e-01 : f32
    %27 = vector.broadcast %cst_18 : f32 to vector<8x8xf32>
    %28 = arith.mulf %25, %27 : vector<8x8xf32>
    %c0_19 = arith.constant 0 : index
    %c0_20 = arith.constant 0 : index
    %29 = vector.load %arg5[%c0_19, %c0_20] : memref<1x8xf32, #tpu.memory_space<vmem>>, vector<1x8xf32>
    %30 = vector.broadcast %29 : vector<1x8xf32> to vector<8x8xf32>
    %31 = arith.addf %28, %30 : vector<8x8xf32>
    %c0_21 = arith.constant 0 : index
    %c0_22 = arith.constant 0 : index
    %32 = vector.load %arg5[%c0_21, %c0_22] : memref<1x8xf32, #tpu.memory_space<vmem>>, vector<1x8xf32>
    %33 = vector.broadcast %32 : vector<1x8xf32> to vector<8x8xf32>
    %34 = arith.addf %26, %33 : vector<8x8xf32>
    %35 = tpu.concatenate %18, %31, %34 in 1 : vector<8x32xf32>, vector<8x8xf32>, vector<8x8xf32> -> vector<8x48xf32>
    %c0_23 = arith.constant 0 : index
    %c0_24 = arith.constant 0 : index
    %36 = vector.load %arg8[%c0_23, %c0_24] : memref<8x48xf32, #tpu.memory_space<vmem>>, vector<8x48xf32>
    tpu.vector_store %arg8[%c0_23, %c0_24], %35 {strides = array<i32>} : memref<8x48xf32, #tpu.memory_space<vmem>>, vector<8x48xf32>,
    return
  }
}

</mosaic_0001>

<llo_original>
// kernel: math_path_layer_forward.1
$region0: #{math_path_layer_forward.1}
  #allocation0 [shape = 'u32[]', space=smem, size = 0x4, offset = 0x4, fixed_abs, tag = 'smem constant byte address 0x4 - core index']
  #allocation1 [shape = 'u32[144,128]{1,0:T(1,128)}', space=vmem, size = 0x12000, scoped, tag = 'internal scratch']
  %s0 = inlined_call_operand.hbm [shape: f32[8,32], index: 0, kind: input, shape index: {}]
  %s1 = inlined_call_operand.vmem [shape: f32[32,128], index: 1, kind: input, shape index: {}]
  %s2 = inlined_call_operand.vmem [shape: f32[1,128], index: 2, kind: input, shape index: {}]
  %s3 = inlined_call_operand.vmem [shape: f32[16,8], index: 3, kind: input, shape index: {}]
  %s4 = inlined_call_operand.vmem [shape: f32[8,8], index: 4, kind: input, shape index: {}]
  %s5 = inlined_call_operand.vmem [shape: f32[1,8], index: 5, kind: input, shape index: {}]
  %s6 = inlined_call_operand.vmem [shape: f32[128,128], index: 6, kind: input, shape index: {}]
  %s7 = inlined_call_operand.vmem [shape: f32[128,32], index: 7, kind: input, shape index: {}]
  %s8 = inlined_call_operand.hbm [shape: f32[8,48], index: 8, kind: output, shape index: {}]
  %s9 = sld [smem:[#allocation0]]
  $region46: #{math_path_layer_forward.1} parent=0
    _
  %s11 = ssub.s32 1, %s9
  %s12 = scalar_select 0, %s11, %s9
  $region1: #{math_path_layer_forward.1} parent=0
    #allocation2 [shape = 'u8[4096]{0}', space=vmem, size = 0x1000, scoped, tag = 'input window, operand 0, single buffered']
    #allocation3 [shape = 's32[1]{0}', space=sflag, size = 0x4, scoped, tag = 'scoped memory for math_path_layer_forward.1']
    #allocation4 [shape = 's32[1]{0}', space=sflag, size = 0x4, scoped, tag = 'scoped memory for math_path_layer_forward.1']
    #allocation5 [shape = 'u8[4096]{0}', space=vmem, size = 0x1000, scoped, tag = 'output window, operand 0, single buffered']
    %13 = vsyncpa [#allocation3], 0
    %14 = vsyncpa [#allocation4], 0
    // Predicated region
    $region2: #{math_path_layer_forward.1} parent=1 // pred_check
      _
    $region3: #{math_path_layer_forward.1} parent=1 // pred_check_branch
      %16 = sbr.rel (0) target = $region5
    $region4: #{math_path_layer_forward.1} parent=1 // pred_region
      %s18 = ssub.s32 128, 128
      %19 = vsyncadd [#allocation3], %s18
      %s21 = sshll.u32 [#allocation2], 4
      %s22 = int_to_ptr.vmem [resolvable:$true] %s21
      %24 = dma.hbm_to_vmem [thread:$0]  %s0, 128, %s22, [#allocation3]
    $region5: #{math_path_layer_forward.1} parent=1 // pred_fallthru
      _
    // Predicated region
    $region6: #{math_path_layer_forward.1} parent=1 // pred_check
      _
    $region7: #{math_path_layer_forward.1} parent=1 // pred_check_branch
      %26 = sbr.rel (0) target = $region9
    $region8: #{math_path_layer_forward.1} parent=1 // pred_region
      _
    $region9: #{math_path_layer_forward.1} parent=1 // pred_fallthru
      _
    // Predicated region
    $region10: #{math_path_layer_forward.1} parent=1 // pred_check
      _
    $region11: #{math_path_layer_forward.1} parent=1 // pred_check_branch
      %28 = sbr.rel (0) target = $region13
    $region12: #{math_path_layer_forward.1} parent=1 // pred_region
      _
    $region13: #{math_path_layer_forward.1} parent=1 // pred_fallthru
      _
    // Predicated region
    $region14: #{math_path_layer_forward.1} parent=1 // pred_check
      _
    $region15: #{math_path_layer_forward.1} parent=1 // pred_check_branch
      %30 = sbr.rel (0) target = $region17
    $region16: #{math_path_layer_forward.1} parent=1 // pred_region
      _
    $region17: #{math_path_layer_forward.1} parent=1 // pred_fallthru
      _
    // Predicated region
    $region18: #{math_path_layer_forward.1} parent=1 // pred_check
      _
    $region19: #{math_path_layer_forward.1} parent=1 // pred_check_branch
      %32 = sbr.rel (0) target = $region21
    $region20: #{math_path_layer_forward.1} parent=1 // pred_region
      _
    $region21: #{math_path_layer_forward.1} parent=1 // pred_fallthru
      _
    // Predicated region
    $region22: #{math_path_layer_forward.1} parent=1 // pred_check
      _
    $region23: #{math_path_layer_forward.1} parent=1 // pred_check_branch
      %34 = sbr.rel (0) target = $region25
    $region24: #{math_path_layer_forward.1} parent=1 // pred_region
      _
    $region25: #{math_path_layer_forward.1} parent=1 // pred_fallthru
      _
    // Predicated region
    $region26: #{math_path_layer_forward.1} parent=1 // pred_check
      _
    $region27: #{math_path_layer_forward.1} parent=1 // pred_check_branch
      %36 = sbr.rel (0) target = $region29
    $region28: #{math_path_layer_forward.1} parent=1 // pred_region
      _
    $region29: #{math_path_layer_forward.1} parent=1 // pred_fallthru
      _
    // Predicated region
    $region30: #{math_path_layer_forward.1} parent=1 // pred_check
      _
    $region31: #{math_path_layer_forward.1} parent=1 // pred_check_branch
      %38 = sbr.rel (0) target = $region33
    $region32: #{math_path_layer_forward.1} parent=1 // pred_region
      _
    $region33: #{math_path_layer_forward.1} parent=1 // pred_fallthru
      _
    // Predicated region
    $region34: #{math_path_layer_forward.1} parent=1 // pred_check
      _
    $region35: #{math_path_layer_forward.1} parent=1 // pred_check_branch
      %40 = sbr.rel (0) target = $region37
    $region36: #{math_path_layer_forward.1} parent=1 // pred_region
      %41 = dma.done [#allocation3], 128
    $region37: #{math_path_layer_forward.1} parent=1 // pred_fallthru
      _
    %v42 = vld [vmem:[#allocation2] sm:$0xff]
    %v43 = vld [vmem:[%s1] sm:$0xff]
    %v44 = vld [vmem:[%s1 + $0x8] sm:$0xff]
    %v45 = vld [vmem:[%s1 + $0x10] sm:$0xff]
    %v46 = vld [vmem:[%s1 + $0x18] sm:$0xff]
    %v47 = vld [vmem:[%s2] sm:$0x1]
    %v49 = vlaneseq
    %v50 = vshrl.u32 %v49, 7
    %v51 = vsub.s32 0, %v50
    %v52 = vrot.slane %v47, %v51
    %vm54 = vcmask 261120
    %v56 = vsel %vm54, %v42, 0
    %58 = vmatprep.subr.mxu0 0.0
    %59 = vmatpush1.msra.mxu0 %v43
    %60 = vmatprep.subr.mxu0 0.0
    %61 = vmatpush1.msra.mxu0 %v44
    %62 = vmatprep.subr.mxu0 0.0
    %63 = vmatpush1.msra.mxu0 %v45
    %64 = vmatprep.subr.mxu0 0.0
    %65 = vmatpush1.msra.mxu0 %v46
    %66 = vmatprep.subr.mxu0 0.0
    %67 = vmatpush1.msra.mxu0 0.0
    %68 = vmatprep.subr.mxu0 0.0
    %69 = vmatpush1.msra.mxu0 0.0
    %70 = vmatprep.subr.mxu0 0.0
    %71 = vmatpush1.msra.mxu0 0.0
    %72 = vmatprep.subr.mxu0 0.0
    %73 = vmatpush1.msra.mxu0 0.0
    %74 = vmatprep.subr.mxu0 0.0
    %75 = vmatpush1.msra.mxu0 0.0
    %76 = vmatprep.subr.mxu0 0.0
    %77 = vmatpush1.msra.mxu0 0.0
    %78 = vmatprep.subr.mxu0 0.0
    %79 = vmatpush1.msra.mxu0 0.0
    %80 = vmatprep.subr.mxu0 0.0
    %81 = vmatpush1.msra.mxu0 0.0
    %82 = vmatprep.subr.mxu0 0.0
    %83 = vmatpush1.msra.mxu0 0.0
    %84 = vmatprep.subr.mxu0 0.0
    %85 = vmatpush1.msra.mxu0 0.0
    %86 = vmatprep.subr.mxu0 0.0
    %87 = vmatpush1.msra.mxu0 0.0
    %88 = vmatprep.subr.mxu0 0.0
    %89 = vmatpush1.msra.mxu0 0.0
    %90 = vmatprep.subr.mxu0 0.0
    %91 = vmatpush1.msra.mxu0 0.0
    %92 = vmatprep.subr.mxu0 0.0
    %93 = vmatpush1.msra.mxu0 0.0
    %94 = vmatprep.subr.mxu0 0.0
    %95 = vmatpush1.msra.mxu0 0.0
    %96 = vmatprep.subr.mxu0 0.0
    %97 = vmatpush1.msra.mxu0 0.0
    %98 = vmatprep.subr.mxu0 0.0
    %99 = vmatpush1.msra.mxu0 0.0
    %100 = vmatprep.subr.mxu0 0.0
    %101 = vmatpush1.msra.mxu0 0.0
    %102 = vmatprep.subr.mxu0 0.0
    %103 = vmatpush1.msra.mxu0 0.0
    %104 = vmatprep.subr.mxu0 0.0
    %105 = vmatpush1.msra.mxu0 0.0
    %106 = vmatprep.subr.mxu0 0.0
    %107 = vmatpush1.msra.mxu0 0.0
    %108 = vmatprep.subr.mxu0 0.0
    %109 = vmatpush1.msra.mxu0 0.0
    %110 = vmatprep.subr.mxu0 0.0
    %111 = vmatpush1.msra.mxu0 0.0
    %112 = vmatprep.subr.mxu0 0.0
    %113 = vmatpush1.msra.mxu0 0.0
    %114 = vmatprep.subr.mxu0 0.0
    %115 = vmatpush1.msra.mxu0 0.0
    %116 = vmatprep.subr.mxu0 0.0
    %117 = vmatpush1.msra.mxu0 0.0
    %118 = vmatprep.subr.mxu0 0.0
    %119 = vmatpush1.msra.mxu0 0.0
    %120 = vmatprep.subr.mxu0 0.0
    %121 = vmatpush1.msra.mxu0 0.0
    %122 = vmatprep.mubr.f32.mxu0 0.0
    %123 = vmatmul.mubr.f32.gmra.mrb[0].mxu0 %v56
    %v124 = vpop.f32.mrb[0].mxu0
    %v125 = vadd.f32 %v52, %v124
    %v126 = vpop.f32.mrb[0].mxu0
    %127 = vdwg.mxu0
    %128 = vmax.xlane.f32.xlu0 %v125
    %v129 = vpop.xlane.xlu0 %128
    %v130 = vsub.f32 %v125, %v129
    %v131 = vmul.f32 %v130, 1.442695
    %v132 = vpow.pop %v131
    %v133 = vld [vmem:[%s6] sm:$0xff]
    %v134 = vld [vmem:[%s6 + $0x8] sm:$0xff]
    %v135 = vld [vmem:[%s6 + $0x10] sm:$0xff]
    %v136 = vld [vmem:[%s6 + $0x18] sm:$0xff]
    %v137 = vld [vmem:[%s6 + $0x20] sm:$0xff]
    %v138 = vld [vmem:[%s6 + $0x28] sm:$0xff]
    %v139 = vld [vmem:[%s6 + $0x30] sm:$0xff]
    %v140 = vld [vmem:[%s6 + $0x38] sm:$0xff]
    %v141 = vld [vmem:[%s6 + $0x40] sm:$0xff]
    %v142 = vld [vmem:[%s6 + $0x48] sm:$0xff]
    %v143 = vld [vmem:[%s6 + $0x50] sm:$0xff]
    %v144 = vld [vmem:[%s6 + $0x58] sm:$0xff]
    %v145 = vld [vmem:[%s6 + $0x60] sm:$0xff]
    %v146 = vld [vmem:[%s6 + $0x68] sm:$0xff]
    %v147 = vld [vmem:[%s6 + $0x70] sm:$0xff]
    %v148 = vld [vmem:[%s6 + $0x78] sm:$0xff]
    %149 = vmatprep.subr.mxu0 0.0
    %150 = vmatpush1.msra.mxu0 %v133
    %151 = vmatprep.subr.mxu0 0.0
    %152 = vmatpush1.msra.mxu0 %v134
    %153 = vmatprep.subr.mxu0 0.0
    %154 = vmatpush1.msra.mxu0 %v135
    %155 = vmatprep.subr.mxu0 0.0
    %156 = vmatpush1.msra.mxu0 %v136
    %157 = vmatprep.subr.mxu0 0.0
    %158 = vmatpush1.msra.mxu0 %v137
    %159 = vmatprep.subr.mxu0 0.0
    %160 = vmatpush1.msra.mxu0 %v138
    %161 = vmatprep.subr.mxu0 0.0
    %162 = vmatpush1.msra.mxu0 %v139
    %163 = vmatprep.subr.mxu0 0.0
    %164 = vmatpush1.msra.mxu0 %v140
    %165 = vmatprep.subr.mxu0 0.0
    %166 = vmatpush1.msra.mxu0 %v141
    %167 = vmatprep.subr.mxu0 0.0
    %168 = vmatpush1.msra.mxu0 %v142
    %169 = vmatprep.subr.mxu0 0.0
    %170 = vmatpush1.msra.mxu0 %v143
    %171 = vmatprep.subr.mxu0 0.0
    %172 = vmatpush1.msra.mxu0 %v144
    %173 = vmatprep.subr.mxu0 0.0
    %174 = vmatpush1.msra.mxu0 %v145
    %175 = vmatprep.subr.mxu0 0.0
    %176 = vmatpush1.msra.mxu0 %v146
    %177 = vmatprep.subr.mxu0 0.0
    %178 = vmatpush1.msra.mxu0 %v147
    %179 = vmatprep.subr.mxu0 0.0
    %180 = vmatpush1.msra.mxu0 %v148
    %181 = vmatprep.subr.mxu0 0.0
    %182 = vmatpush1.msra.mxu0 0.0
    %183 = vmatprep.subr.mxu0 0.0
    %184 = vmatpush1.msra.mxu0 0.0
    %185 = vmatprep.subr.mxu0 0.0
    %186 = vmatpush1.msra.mxu0 0.0
    %187 = vmatprep.subr.mxu0 0.0
    %188 = vmatpush1.msra.mxu0 0.0
    %189 = vmatprep.subr.mxu0 0.0
    %190 = vmatpush1.msra.mxu0 0.0
    %191 = vmatprep.subr.mxu0 0.0
    %192 = vmatpush1.msra.mxu0 0.0
    %193 = vmatprep.subr.mxu0 0.0
    %194 = vmatpush1.msra.mxu0 0.0
    %195 = vmatprep.subr.mxu0 0.0
    %196 = vmatpush1.msra.mxu0 0.0
    %197 = vmatprep.subr.mxu0 0.0
    %198 = vmatpush1.msra.mxu0 0.0
    %199 = vmatprep.subr.mxu0 0.0
    %200 = vmatpush1.msra.mxu0 0.0
    %201 = vmatprep.subr.mxu0 0.0
    %202 = vmatpush1.msra.mxu0 0.0
    %203 = vmatprep.subr.mxu0 0.0
    %204 = vmatpush1.msra.mxu0 0.0
    %205 = vmatprep.subr.mxu0 0.0
    %206 = vmatpush1.msra.mxu0 0.0
    %207 = vmatprep.subr.mxu0 0.0
    %208 = vmatpush1.msra.mxu0 0.0
    %209 = vmatprep.subr.mxu0 0.0
    %210 = vmatpush1.msra.mxu0 0.0
    %211 = vmatprep.subr.mxu0 0.0
    %212 = vmatpush1.msra.mxu0 0.0
    %213 = vmatprep.mubr.f32.mxu0 0.0
    %214 = vmatmul.mubr.f32.gmra.mrb[0].mxu0 %v132
    %v215 = vpop.f32.mrb[0].mxu0
    %v216 = vadd.f32 0.0, %v215
    %v217 = vpop.f32.mrb[0].mxu0
    %218 = vdwg.mxu0
    %v219 = vmax.f32 %v216, 1e-30
    %v220 = vrcp.pop %v219
    %v221 = vmul.f32 %v132, %v220
    %v222 = vld [vmem:[%s7] sm:$0xff]
    %v223 = vld [vmem:[%s7 + $0x8] sm:$0xff]
    %v224 = vld [vmem:[%s7 + $0x10] sm:$0xff]
    %v225 = vld [vmem:[%s7 + $0x18] sm:$0xff]
    %v226 = vld [vmem:[%s7 + $0x20] sm:$0xff]
    %v227 = vld [vmem:[%s7 + $0x28] sm:$0xff]
    %v228 = vld [vmem:[%s7 + $0x30] sm:$0xff]
    %v229 = vld [vmem:[%s7 + $0x38] sm:$0xff]
    %v230 = vld [vmem:[%s7 + $0x40] sm:$0xff]
    %v231 = vld [vmem:[%s7 + $0x48] sm:$0xff]
    %v232 = vld [vmem:[%s7 + $0x50] sm:$0xff]
    %v233 = vld [vmem:[%s7 + $0x58] sm:$0xff]
    %v234 = vld [vmem:[%s7 + $0x60] sm:$0xff]
    %v235 = vld [vmem:[%s7 + $0x68] sm:$0xff]
    %v236 = vld [vmem:[%s7 + $0x70] sm:$0xff]
    %v237 = vld [vmem:[%s7 + $0x78] sm:$0xff]
    %238 = vmatprep.subr.mxu0 0.0
    %239 = vmatpush1.msra.mxu0 %v222
    %240 = vmatprep.subr.mxu0 0.0
    %241 = vmatpush1.msra.mxu0 %v223
    %242 = vmatprep.subr.mxu0 0.0
    %243 = vmatpush1.msra.mxu0 %v224
    %244 = vmatprep.subr.mxu0 0.0
    %245 = vmatpush1.msra.mxu0 %v225
    %246 = vmatprep.subr.mxu0 0.0
    %247 = vmatpush1.msra.mxu0 %v226
    %248 = vmatprep.subr.mxu0 0.0
    %249 = vmatpush1.msra.mxu0 %v227
    %250 = vmatprep.subr.mxu0 0.0
    %251 = vmatpush1.msra.mxu0 %v228
    %252 = vmatprep.subr.mxu0 0.0
    %253 = vmatpush1.msra.mxu0 %v229
    %254 = vmatprep.subr.mxu0 0.0
    %255 = vmatpush1.msra.mxu0 %v230
    %256 = vmatprep.subr.mxu0 0.0
    %257 = vmatpush1.msra.mxu0 %v231
    %258 = vmatprep.subr.mxu0 0.0
    %259 = vmatpush1.msra.mxu0 %v232
    %260 = vmatprep.subr.mxu0 0.0
    %261 = vmatpush1.msra.mxu0 %v233
    %262 = vmatprep.subr.mxu0 0.0
    %263 = vmatpush1.msra.mxu0 %v234
    %264 = vmatprep.subr.mxu0 0.0
    %265 = vmatpush1.msra.mxu0 %v235
    %266 = vmatprep.subr.mxu0 0.0
    %267 = vmatpush1.msra.mxu0 %v236
    %268 = vmatprep.subr.mxu0 0.0
    %269 = vmatpush1.msra.mxu0 %v237
    %270 = vmatprep.subr.mxu0 0.0
    %271 = vmatpush1.msra.mxu0 0.0
    %272 = vmatprep.subr.mxu0 0.0
    %273 = vmatpush1.msra.mxu0 0.0
    %274 = vmatprep.subr.mxu0 0.0
    %275 = vmatpush1.msra.mxu0 0.0
    %276 = vmatprep.subr.mxu0 0.0
    %277 = vmatpush1.msra.mxu0 0.0
    %278 = vmatprep.subr.mxu0 0.0
    %279 = vmatpush1.msra.mxu0 0.0
    %280 = vmatprep.subr.mxu0 0.0
    %281 = vmatpush1.msra.mxu0 0.0
    %282 = vmatprep.subr.mxu0 0.0
    %283 = vmatpush1.msra.mxu0 0.0
    %284 = vmatprep.subr.mxu0 0.0
    %285 = vmatpush1.msra.mxu0 0.0
    %286 = vmatprep.subr.mxu0 0.0
    %287 = vmatpush1.msra.mxu0 0.0
    %288 = vmatprep.subr.mxu0 0.0
    %289 = vmatpush1.msra.mxu0 0.0
    %290 = vmatprep.subr.mxu0 0.0
    %291 = vmatpush1.msra.mxu0 0.0
    %292 = vmatprep.subr.mxu0 0.0
    %293 = vmatpush1.msra.mxu0 0.0
    %294 = vmatprep.subr.mxu0 0.0
    %295 = vmatpush1.msra.mxu0 0.0
    %296 = vmatprep.subr.mxu0 0.0
    %297 = vmatpush1.msra.mxu0 0.0
    %298 = vmatprep.subr.mxu0 0.0
    %299 = vmatpush1.msra.mxu0 0.0
    %300 = vmatprep.subr.mxu0 0.0
    %301 = vmatpush1.msra.mxu0 0.0
    %302 = vmatprep.mubr.f32.mxu0 0.0
    %303 = vmatmul.mubr.f32.gmra.mrb[0].mxu0 %v221
    %v304 = vpop.f32.mrb[0].mxu0
    %v305 = vadd.f32 0.0, %v304
    %v306 = vpop.f32.mrb[0].mxu0
    %307 = vdwg.mxu0
    %v308 = vld [vmem:[%s3] sm:$0xff]
    %v309 = vld [vmem:[%s3 + $0x8] sm:$0xff]
    %v310 = vld [vmem:[%s4] sm:$0xff]
    %vm311 = vcmask 64512
    %v313 = vsel %vm311, %v308, 0
    %v316 = vsel %vm311, %v309, 0
    %318 = vmatprep.subr.mxu0 0.0
    %319 = vmatpush1.msra.mxu0 %v310
    %320 = vmatprep.subr.mxu0 0.0
    %321 = vmatpush1.msra.mxu0 0.0
    %322 = vmatprep.subr.mxu0 0.0
    %323 = vmatpush1.msra.mxu0 0.0
    %324 = vmatprep.subr.mxu0 0.0
    %325 = vmatpush1.msra.mxu0 0.0
    %326 = vmatprep.subr.mxu0 0.0
    %327 = vmatpush1.msra.mxu0 0.0
    %328 = vmatprep.subr.mxu0 0.0
    %329 = vmatpush1.msra.mxu0 0.0
    %330 = vmatprep.subr.mxu0 0.0
    %331 = vmatpush1.msra.mxu0 0.0
    %332 = vmatprep.subr.mxu0 0.0
    %333 = vmatpush1.msra.mxu0 0.0
    %334 = vmatprep.subr.mxu0 0.0
    %335 = vmatpush1.msra.mxu0 0.0
    %336 = vmatprep.subr.mxu0 0.0
    %337 = vmatpush1.msra.mxu0 0.0
    %338 = vmatprep.subr.mxu0 0.0
    %339 = vmatpush1.msra.mxu0 0.0
    %340 = vmatprep.subr.mxu0 0.0
    %341 = vmatpush1.msra.mxu0 0.0
    %342 = vmatprep.subr.mxu0 0.0
    %343 = vmatpush1.msra.mxu0 0.0
    %344 = vmatprep.subr.mxu0 0.0
    %345 = vmatpush1.msra.mxu0 0.0
    %346 = vmatprep.subr.mxu0 0.0
    %347 = vmatpush1.msra.mxu0 0.0
    %348 = vmatprep.subr.mxu0 0.0
    %349 = vmatpush1.msra.mxu0 0.0
    %350 = vmatprep.subr.mxu0 0.0
    %351 = vmatpush1.msra.mxu0 0.0
    %352 = vmatprep.subr.mxu0 0.0
    %353 = vmatpush1.msra.mxu0 0.0
    %354 = vmatprep.subr.mxu0 0.0
    %355 = vmatpush1.msra.mxu0 0.0
    %356 = vmatprep.subr.mxu0 0.0
    %357 = vmatpush1.msra.mxu0 0.0
    %358 = vmatprep.subr.mxu0 0.0
    %359 = vmatpush1.msra.mxu0 0.0
    %360 = vmatprep.subr.mxu0 0.0
    %361 = vmatpush1.msra.mxu0 0.0
    %362 = vmatprep.subr.mxu0 0.0
    %363 = vmatpush1.msra.mxu0 0.0
    %364 = vmatprep.subr.mxu0 0.0
    %365 = vmatpush1.msra.mxu0 0.0
    %366 = vmatprep.subr.mxu0 0.0
    %367 = vmatpush1.msra.mxu0 0.0
    %368 = vmatprep.subr.mxu0 0.0
    %369 = vmatpush1.msra.mxu0 0.0
    %370 = vmatprep.subr.mxu0 0.0
    %371 = vmatpush1.msra.mxu0 0.0
    %372 = vmatprep.subr.mxu0 0.0
    %373 = vmatpush1.msra.mxu0 0.0
    %374 = vmatprep.subr.mxu0 0.0
    %375 = vmatpush1.msra.mxu0 0.0
    %376 = vmatprep.subr.mxu0 0.0
    %377 = vmatpush1.msra.mxu0 0.0
    %378 = vmatprep.subr.mxu0 0.0
    %379 = vmatpush1.msra.mxu0 0.0
    %380 = vmatprep.subr.mxu0 0.0
    %381 = vmatpush1.msra.mxu0 0.0
    %382 = vmatprep.mubr.f32.mxu0 0.0
    %383 = vmatmul.mubr.f32.gmra.mrb[0].mxu0 %v313
    %v384 = vpop.f32.mrb[0].mxu0
    %v385 = vadd.f32 0.0, %v384
    %v386 = vpop.f32.mrb[0].mxu0
    %387 = vmatprep.mubr.f32.mxu0 0.0
    %388 = vmatmul.mubr.f32.gmra.mrb[0].mxu0 %v316
    %v389 = vpop.f32.mrb[0].mxu0
    %v390 = vadd.f32 0.0, %v389
    %v391 = vpop.f32.mrb[0].mxu0
    %392 = vdwg.mxu0
    %v393 = vadd.f32 %v385, %v390
    %v394 = vmax.f32 %v385, %v390
    %v395 = vmul.f32 %v393, 0.5
    %v396 = vld [vmem:[%s5] sm:$0x1]
    %v398 = vlaneseq
    %v399 = vshrl.u32 %v398, 7
    %v400 = vsub.s32 0, %v399
    %v401 = vrot.slane %v396, %v400
    %v403 = vadd.f32 %v395, %v401
    %v404 = vadd.f32 %v394, %v401
    %406 = vrot.lane.b32.xlu0 %v403, 32
    %v407 = vpop.permute.xlu0 %406
    %410 = vrot.lane.b32.xlu0 %v404, 40
    %v411 = vpop.permute.xlu0 %410
    %v413 = vsel %vm54, %v305, %v407
    %vm414 = vcmask 326656
    %v415 = vsel %vm414, %v413, %v411
    %vm416 = vcmask 392192
    %417 = vst.msk [vmem:[#allocation5] sm:$0xff] %vm416, %v415
    // Predicated region
    $region38: #{math_path_layer_forward.1} parent=1 // pred_check
      _
    $region39: #{math_path_layer_forward.1} parent=1 // pred_check_branch
      %419 = sbr.rel (0) target = $region41
    $region40: #{math_path_layer_forward.1} parent=1 // pred_region
      %s421 = ssub.s32 128, 128
      %422 = vsyncadd [#allocation4], %s421
      %s424 = sshll.u32 [#allocation5], 4
      %s425 = int_to_ptr.vmem [resolvable:$true] %s424
      %427 = dma.vmem_to_hbm [thread:$0]  %s425, 128, %s8, [#allocation4]
    $region41: #{math_path_layer_forward.1} parent=1 // pred_fallthru
      _
    // Predicated region
    $region42: #{math_path_layer_forward.1} parent=1 // pred_check
      _
    $region43: #{math_path_layer_forward.1} parent=1 // pred_check_branch
      %429 = sbr.rel (0) target = $region45
    $region44: #{math_path_layer_forward.1} parent=1 // pred_region
      %430 = dma.done [#allocation4], 128
    $region45: #{math_path_layer_forward.1} parent=1 // pred_fallthru
      _
    %431 = vsyncpa [#allocation3], 1
    %432 = vsyncpa [#allocation4], 1

</llo_original>
